<compile_context>
chip_gen: v7x
topology: tpu7x:2x2x1
jax: 0.10.0
libtpu: 0.0.40
codegen_flags: <defaults>
</compile_context>

<pallas_src>
import jax
import jax.numpy as jnp
from jax.experimental import pallas as pl
from jax.experimental.pallas import tpu as pltpu

STATE_DIM = 16
ACTION_DIM = 4
HIDDEN1 = 128
HIDDEN2 = 256
HIDDEN3 = 128
MAX_ACTION = 2.0
BATCH = 8

# ---- packed-parameter layout (rows of a (PACK_ROWS, 128) bf16 buffer) ------
PACK_WIDTH = 128                      # lane width of the pack (= one vreg)
W1_R0 = 0                             # w1            : (16, 128)
W2A_R0 = W1_R0 + STATE_DIM            # w2[:, 0:128]  : (128, 128)
W2B_R0 = W2A_R0 + HIDDEN1             # w2[:, 128:256]: (128, 128)
W3A_R0 = W2B_R0 + HIDDEN1             # w3[0:128, :]  : (128, 128)
W3B_R0 = W3A_R0 + HIDDEN2 // 2        # w3[128:256, :]: (128, 128)
WH_R0 = W3B_R0 + HIDDEN2 // 2         # [wmu||wls] padded to (128, 128)
B_R0 = WH_R0 + HIDDEN3                # bias block    : (16, 128)
PACK_ROWS = B_R0 + 16                 # = 672 (all offsets multiples of 16)


def _sac_actor_kernel(state_ref, eps_ref, wp_ref, out_ref):
    f32 = jnp.float32
    bf16 = jnp.bfloat16

    # Bias block: row 0 = b1, 1 = b2[:128], 2 = b2[128:], 3 = b3, 4 = [bmu||bls]
    bias = wp_ref[B_R0:PACK_ROWS, :].astype(f32)        # (16, 128)
    b1 = bias[0:1, :]
    b2a = bias[1:2, :]
    b2b = bias[2:3, :]
    b3 = bias[3:4, :]
    bh = bias[4:5, :]

    x = state_ref[...].astype(bf16)                     # (B, 16)

    # l1 + relu
    h1 = jnp.maximum(
        jnp.dot(x, wp_ref[W1_R0:W2A_R0, :], preferred_element_type=f32) + b1,
        0.0)
    h1b = h1.astype(bf16)

    # l2 + relu (output dim 256 split into two 128-lane halves)
    h2a = jnp.maximum(
        jnp.dot(h1b, wp_ref[W2A_R0:W2B_R0, :], preferred_element_type=f32) + b2a,
        0.0)
    h2b = jnp.maximum(
        jnp.dot(h1b, wp_ref[W2B_R0:W3A_R0, :], preferred_element_type=f32) + b2b,
        0.0)

    # l3 (no activation): split-K accumulation over the two 128-wide halves
    h3 = (jnp.dot(h2a.astype(bf16), wp_ref[W3A_R0:W3B_R0, :],
                  preferred_element_type=f32)
          + jnp.dot(h2b.astype(bf16), wp_ref[W3B_R0:WH_R0, :],
                    preferred_element_type=f32)
          + b3)

    # Fused mu/log_std head: lanes 0:4 = mu, lanes 4:8 = log_std
    head = jnp.dot(h3.astype(bf16), wp_ref[WH_R0:B_R0, :],
                   preferred_element_type=f32) + bh      # (B, 128)
    mu = head[:, :ACTION_DIM]
    log_std = head[:, ACTION_DIM:2 * ACTION_DIM]

    std = jnp.exp(log_std)
    eps = eps_ref[...]                                   # (B, ACTION_DIM)
    act = mu + std * eps                                 # rsample (explore=True)

    # Normal(mu, std).log_prob(act); (act - mu)/std == eps exactly.
    log_prob = -0.5 * eps * eps - log_std - 0.5 * jnp.log(2.0 * jnp.pi)

    # tanh-squash correction: 2 * (log(2) - act - softplus(-2*act)),
    # with stable softplus(y) = max(y, 0) + log1p(exp(-|y|)).
    y = -2.0 * act
    softplus_y = jnp.maximum(y, 0.0) + jnp.log1p(jnp.exp(-jnp.abs(y)))
    correction = 2.0 * (jnp.log(2.0) - act - softplus_y)

    log_pi = jnp.sum(log_prob - correction, axis=-1, keepdims=True)   # (B, 1)

    # Single lane-packed output buffer: lanes 0:4 = squashed action,
    # lanes 4:8 = log_pi (replicated) -> one writeback DMA.
    out_ref[:, :ACTION_DIM] = MAX_ACTION * jnp.tanh(act)
    out_ref[:, ACTION_DIM:] = jnp.broadcast_to(log_pi,
                                               (log_pi.shape[0], ACTION_DIM))


def pack_params(p):
    """Pack all weights+biases into one (PACK_ROWS, 128) bf16 buffer (run once)."""
    blocks = [
        p["w1"],                      # (16, 128)
        p["w2"][:, :PACK_WIDTH],      # (128, 128)
        p["w2"][:, PACK_WIDTH:],      # (128, 128)
        p["w3"][:HIDDEN2 // 2, :],    # (128, 128)
        p["w3"][HIDDEN2 // 2:, :],    # (128, 128)
    ]
    wh = jnp.concatenate([p["wmu"], p["wls"]], axis=1)        # (128, 8)
    wh = jnp.pad(wh, ((0, 0), (0, PACK_WIDTH - 2 * ACTION_DIM)))
    blocks.append(wh)                                         # (128, 128)

    bias = jnp.zeros((16, PACK_WIDTH), jnp.float32)
    bias = bias.at[0, :HIDDEN1].set(p["b1"][0])
    bias = bias.at[1, :].set(p["b2"][0, :PACK_WIDTH])
    bias = bias.at[2, :].set(p["b2"][0, PACK_WIDTH:])
    bias = bias.at[3, :HIDDEN3].set(p["b3"][0])
    bh = jnp.concatenate([p["bmu"][0], p["bls"][0]])          # (8,)
    bias = bias.at[4, :2 * ACTION_DIM].set(bh)
    blocks.append(bias)                                       # (16, 128)

    pack = jnp.concatenate([b.astype(jnp.float32) for b in blocks], axis=0)
    assert pack.shape == (PACK_ROWS, PACK_WIDTH)
    return pack.astype(jnp.bfloat16)


def sac_actor_forward(state, eps, wpack):
    """state: (B, STATE_DIM) f32, eps: (B, ACTION_DIM) f32 N(0,1) noise,
    wpack: (PACK_ROWS, 128) bf16 packed parameters."""
    batch = state.shape[0]
    vmem = pl.BlockSpec(memory_space=pltpu.MemorySpace.VMEM)
    out = pl.pallas_call(
        _sac_actor_kernel,
        out_shape=jax.ShapeDtypeStruct((batch, 2 * ACTION_DIM), jnp.float32),
        in_specs=[vmem, vmem, vmem],
        out_specs=vmem,
    )(state, eps, wpack)
    act = out[:, :ACTION_DIM]
    log_pi = out[:, ACTION_DIM:ACTION_DIM + 1]
    return act, log_pi


def init_params(key):
    """Deterministic synthetic parameters (no checkpoint load)."""
    ks = jax.random.split(key, 10)

    def lin(kw, kb, fan_in, fan_out):
        bound = 1.0 / jnp.sqrt(fan_in)
        w = jax.random.uniform(kw, (fan_in, fan_out), jnp.float32, -bound, bound)
        b = jax.random.uniform(kb, (1, fan_out), jnp.float32, -bound, bound)
        return w, b

    w1, b1 = lin(ks[0], ks[1], STATE_DIM, HIDDEN1)
    w2, b2 = lin(ks[2], ks[3], HIDDEN1, HIDDEN2)
    w3, b3 = lin(ks[4], ks[5], HIDDEN2, HIDDEN3)
    wmu, bmu = lin(ks[6], ks[7], HIDDEN3, ACTION_DIM)
    wls, bls = lin(ks[8], ks[9], HIDDEN3, ACTION_DIM)
    return dict(w1=w1, b1=b1, w2=w2, b2=b2, w3=w3, b3=b3,
                wmu=wmu, bmu=bmu, wls=wls, bls=bls)


def _reference_forward(state, eps, p):
    """Pure-JAX reference mirroring the PyTorch module (explore=True,
    get_log_pi=True) with the same bf16 weight/bias quantization as the kernel."""
    f32 = jnp.float32
    bf16 = jnp.bfloat16

    def qdot(a, w):
        return jnp.dot(a.astype(bf16), w.astype(bf16), preferred_element_type=f32)

    def qb(b):
        return b.astype(bf16).astype(f32)

    h = jax.nn.relu(qdot(state, p["w1"]) + qb(p["b1"]))
    h = jax.nn.relu(qdot(h, p["w2"]) + qb(p["b2"]))
    h = qdot(h, p["w3"]) + qb(p["b3"])
    mu = qdot(h, p["wmu"]) + qb(p["bmu"])
    log_std = qdot(h, p["wls"]) + qb(p["bls"])
    std = jnp.exp(log_std)
    act = mu + std * eps
    log_prob = -0.5 * ((act - mu) / std) ** 2 - log_std - 0.5 * jnp.log(2.0 * jnp.pi)
    corr = 2.0 * (jnp.log(2.0) - act - jax.nn.softplus(-2.0 * act))
    log_pi = (log_prob.sum(-1) - corr.sum(-1)).reshape(-1, 1)
    return MAX_ACTION * jnp.tanh(act), log_pi


if __name__ == "__main__":
    key = jax.random.PRNGKey(0)
    k_param, k_state, k_eps = jax.random.split(key, 3)

    params = init_params(k_param)
    wpack = pack_params(params)          # packed once; amortized across calls
    state = jax.random.normal(k_state, (BATCH, STATE_DIM), jnp.float32)
    # reparameterization noise for Normal(mu, std).rsample()
    eps = jax.random.normal(k_eps, (BATCH, ACTION_DIM), jnp.float32)

    act, log_pi = jax.jit(sac_actor_forward)(state, eps, wpack)
    jax.block_until_ready((act, log_pi))

    ref_act, ref_log_pi = _reference_forward(state, eps, params)
    assert jnp.allclose(act, ref_act, atol=1e-3, rtol=1e-3)
    assert jnp.allclose(log_pi, ref_log_pi, atol=1e-3, rtol=1e-3)

    print("KERNEL_OK")
</pallas_src>

<mosaic_0001>
module attributes {stable_mosaic.version = 11 : i64} {
  func.func @_sac_actor_kernel(%arg0: memref<8x16xf32, #tpu.memory_space<vmem>>, %arg1: memref<8x4xf32, #tpu.memory_space<vmem>>, %arg2: memref<672x128xbf16, #tpu.memory_space<vmem>>, %arg3: memref<8x8xf32, #tpu.memory_space<vmem>>) attributes {dimension_semantics = [], scalar_prefetch = 0 : i64, scratch_operands = 0 : i64, tpu.core_type = #tpu.core_type<tc>} {
    %c656 = arith.constant 656 : index
    %c0 = arith.constant 0 : index
    %0 = vector.load %arg2[%c656, %c0] : memref<672x128xbf16, #tpu.memory_space<vmem>>, vector<16x128xbf16>
    %1 = arith.extf %0 : vector<16x128xbf16> to vector<16x128xf32>
    %2 = vector.extract_strided_slice %1 {offsets = [0, 0], sizes = [1, 128], strides = [1, 1]} : vector<16x128xf32> to vector<1x128xf32>
    %3 = vector.extract_strided_slice %1 {offsets = [1, 0], sizes = [1, 128], strides = [1, 1]} : vector<16x128xf32> to vector<1x128xf32>
    %4 = vector.extract_strided_slice %1 {offsets = [2, 0], sizes = [1, 128], strides = [1, 1]} : vector<16x128xf32> to vector<1x128xf32>
    %5 = vector.extract_strided_slice %1 {offsets = [3, 0], sizes = [1, 128], strides = [1, 1]} : vector<16x128xf32> to vector<1x128xf32>
    %6 = vector.extract_strided_slice %1 {offsets = [4, 0], sizes = [1, 128], strides = [1, 1]} : vector<16x128xf32> to vector<1x128xf32>
    %c0_0 = arith.constant 0 : index
    %c0_1 = arith.constant 0 : index
    %7 = vector.load %arg0[%c0_0, %c0_1] : memref<8x16xf32, #tpu.memory_space<vmem>>, vector<8x16xf32>
    %8 = arith.truncf %7 : vector<8x16xf32> to vector<8x16xbf16>
    %c0_2 = arith.constant 0 : index
    %c0_3 = arith.constant 0 : index
    %9 = vector.load %arg2[%c0_2, %c0_3] : memref<672x128xbf16, #tpu.memory_space<vmem>>, vector<16x128xbf16>
    %cst = arith.constant dense<0.000000e+00> : vector<8x128xf32>
    %10 = tpu.matmul %8, %9, %cst {dimension_numbers = #tpu.dot_dimension_numbers<[1], [0], [0], [1], [0, 0, 1, 1], [], []>} : vector<8x16xbf16>, vector<16x128xbf16>, vector<8x128xf32> -> vector<8x128xf32>
    %11 = vector.broadcast %2 : vector<1x128xf32> to vector<8x128xf32>
    %12 = arith.addf %10, %11 : vector<8x128xf32>
    %cst_4 = arith.constant 0.000000e+00 : f32
    %13 = vector.broadcast %cst_4 : f32 to vector<8x128xf32>
    %14 = arith.maximumf %12, %13 : vector<8x128xf32>
    %15 = arith.truncf %14 : vector<8x128xf32> to vector<8x128xbf16>
    %c16 = arith.constant 16 : index
    %c0_5 = arith.constant 0 : index
    %16 = vector.load %arg2[%c16, %c0_5] : memref<672x128xbf16, #tpu.memory_space<vmem>>, vector<128x128xbf16>
    %cst_6 = arith.constant dense<0.000000e+00> : vector<8x128xf32>
    %17 = tpu.matmul %15, %16, %cst_6 {dimension_numbers = #tpu.dot_dimension_numbers<[1], [0], [0], [1], [0, 0, 1, 1], [], []>} : vector<8x128xbf16>, vector<128x128xbf16>, vector<8x128xf32> -> vector<8x128xf32>
    %18 = vector.broadcast %3 : vector<1x128xf32> to vector<8x128xf32>
    %19 = arith.addf %17, %18 : vector<8x128xf32>
    %cst_7 = arith.constant 0.000000e+00 : f32
    %20 = vector.broadcast %cst_7 : f32 to vector<8x128xf32>
    %21 = arith.maximumf %19, %20 : vector<8x128xf32>
    %c144 = arith.constant 144 : index
    %c0_8 = arith.constant 0 : index
    %22 = vector.load %arg2[%c144, %c0_8] : memref<672x128xbf16, #tpu.memory_space<vmem>>, vector<128x128xbf16>
    %cst_9 = arith.constant dense<0.000000e+00> : vector<8x128xf32>
    %23 = tpu.matmul %15, %22, %cst_9 {dimension_numbers = #tpu.dot_dimension_numbers<[1], [0], [0], [1], [0, 0, 1, 1], [], []>} : vector<8x128xbf16>, vector<128x128xbf16>, vector<8x128xf32> -> vector<8x128xf32>
    %24 = vector.broadcast %4 : vector<1x128xf32> to vector<8x128xf32>
    %25 = arith.addf %23, %24 : vector<8x128xf32>
    %cst_10 = arith.constant 0.000000e+00 : f32
    %26 = vector.broadcast %cst_10 : f32 to vector<8x128xf32>
    %27 = arith.maximumf %25, %26 : vector<8x128xf32>
    %28 = arith.truncf %21 : vector<8x128xf32> to vector<8x128xbf16>
    %c272 = arith.constant 272 : index
    %c0_11 = arith.constant 0 : index
    %29 = vector.load %arg2[%c272, %c0_11] : memref<672x128xbf16, #tpu.memory_space<vmem>>, vector<128x128xbf16>
    %cst_12 = arith.constant dense<0.000000e+00> : vector<8x128xf32>
    %30 = tpu.matmul %28, %29, %cst_12 {dimension_numbers = #tpu.dot_dimension_numbers<[1], [0], [0], [1], [0, 0, 1, 1], [], []>} : vector<8x128xbf16>, vector<128x128xbf16>, vector<8x128xf32> -> vector<8x128xf32>
    %31 = arith.truncf %27 : vector<8x128xf32> to vector<8x128xbf16>
    %c400 = arith.constant 400 : index
    %c0_13 = arith.constant 0 : index
    %32 = vector.load %arg2[%c400, %c0_13] : memref<672x128xbf16, #tpu.memory_space<vmem>>, vector<128x128xbf16>
    %cst_14 = arith.constant dense<0.000000e+00> : vector<8x128xf32>
    %33 = tpu.matmul %31, %32, %cst_14 {dimension_numbers = #tpu.dot_dimension_numbers<[1], [0], [0], [1], [0, 0, 1, 1], [], []>} : vector<8x128xbf16>, vector<128x128xbf16>, vector<8x128xf32> -> vector<8x128xf32>
    %34 = arith.addf %30, %33 : vector<8x128xf32>
    %35 = vector.broadcast %5 : vector<1x128xf32> to vector<8x128xf32>
    %36 = arith.addf %34, %35 : vector<8x128xf32>
    %37 = arith.truncf %36 : vector<8x128xf32> to vector<8x128xbf16>
    %c528 = arith.constant 528 : index
    %c0_15 = arith.constant 0 : index
    %38 = vector.load %arg2[%c528, %c0_15] : memref<672x128xbf16, #tpu.memory_space<vmem>>, vector<128x128xbf16>
    %cst_16 = arith.constant dense<0.000000e+00> : vector<8x128xf32>
    %39 = tpu.matmul %37, %38, %cst_16 {dimension_numbers = #tpu.dot_dimension_numbers<[1], [0], [0], [1], [0, 0, 1, 1], [], []>} : vector<8x128xbf16>, vector<128x128xbf16>, vector<8x128xf32> -> vector<8x128xf32>
    %40 = vector.broadcast %6 : vector<1x128xf32> to vector<8x128xf32>
    %41 = arith.addf %39, %40 : vector<8x128xf32>
    %42 = vector.extract_strided_slice %41 {offsets = [0, 0], sizes = [8, 4], strides = [1, 1]} : vector<8x128xf32> to vector<8x4xf32>
    %43 = vector.extract_strided_slice %41 {offsets = [0, 4], sizes = [8, 4], strides = [1, 1]} : vector<8x128xf32> to vector<8x4xf32>
    %44 = math.exp %43 : vector<8x4xf32>
    %c0_17 = arith.constant 0 : index
    %c0_18 = arith.constant 0 : index
    %45 = vector.load %arg1[%c0_17, %c0_18] : memref<8x4xf32, #tpu.memory_space<vmem>>, vector<8x4xf32>
    %46 = arith.mulf %44, %45 : vector<8x4xf32>
    %47 = arith.addf %42, %46 : vector<8x4xf32>
    %cst_19 = arith.constant -5.000000e-01 : f32
    %48 = vector.broadcast %cst_19 : f32 to vector<8x4xf32>
    %49 = arith.mulf %48, %45 : vector<8x4xf32>
    %50 = arith.mulf %49, %45 : vector<8x4xf32>
    %51 = arith.subf %50, %43 : vector<8x4xf32>
    %cst_20 = arith.constant 6.28318548 : f32
    %52 = math.log %cst_20 : f32
    %cst_21 = arith.constant 5.000000e-01 : f32
    %53 = arith.mulf %cst_21, %52 : f32
    %54 = vector.broadcast %53 : f32 to vector<8x4xf32>
    %55 = arith.subf %51, %54 : vector<8x4xf32>
    %cst_22 = arith.constant -2.000000e+00 : f32
    %56 = vector.broadcast %cst_22 : f32 to vector<8x4xf32>
    %57 = arith.mulf %56, %47 : vector<8x4xf32>
    %cst_23 = arith.constant 0.000000e+00 : f32
    %58 = vector.broadcast %cst_23 : f32 to vector<8x4xf32>
    %59 = arith.maximumf %57, %58 : vector<8x4xf32>
    %60 = math.absf %57 : vector<8x4xf32>
    %cst_24 = arith.constant 0.000000e+00 : f32
    %61 = vector.broadcast %cst_24 : f32 to vector<8x4xf32>
    %62 = arith.subf %61, %60 : vector<8x4xf32>
    %63 = math.exp %62 : vector<8x4xf32>
    %64 = math.log1p %63 : vector<8x4xf32>
    %65 = arith.addf %59, %64 : vector<8x4xf32>
    %cst_25 = arith.constant 2.000000e+00 : f32
    %66 = math.log %cst_25 : f32
    %67 = vector.broadcast %66 : f32 to vector<8x4xf32>
    %68 = arith.subf %67, %47 : vector<8x4xf32>
    %69 = arith.subf %68, %65 : vector<8x4xf32>
    %cst_26 = arith.constant 2.000000e+00 : f32
    %70 = vector.broadcast %cst_26 : f32 to vector<8x4xf32>
    %71 = arith.mulf %70, %69 : vector<8x4xf32>
    %72 = arith.subf %55, %71 : vector<8x4xf32>
    %cst_27 = arith.constant dense<0.000000e+00> : vector<8xf32>
    %73 = vector.multi_reduction <add>, %72, %cst_27 [1] : vector<8x4xf32> to vector<8xf32>
    %74 = vector.shape_cast %73 : vector<8xf32> to vector<8x1xf32>
    %75 = math.tanh %47 : vector<8x4xf32>
    %cst_28 = arith.constant 2.000000e+00 : f32
    %76 = vector.broadcast %cst_28 : f32 to vector<8x4xf32>
    %77 = arith.mulf %76, %75 : vector<8x4xf32>
    %c0_29 = arith.constant 0 : index
    %c0_30 = arith.constant 0 : index
    %78 = vector.load %arg3[%c0_29, %c0_30] : memref<8x8xf32, #tpu.memory_space<vmem>>, vector<8x4xf32>
    tpu.vector_store %arg3[%c0_29, %c0_30], %77 {strides = array<i32>} : memref<8x8xf32, #tpu.memory_space<vmem>>, vector<8x4xf32>,
    %79 = vector.shape_cast %74 : vector<8x1xf32> to vector<8x1xf32>
    %80 = vector.broadcast %79 : vector<8x1xf32> to vector<8x4xf32>
    %c0_31 = arith.constant 0 : index
    %c4 = arith.constant 4 : index
    %81 = vector.load %arg3[%c0_31, %c4] : memref<8x8xf32, #tpu.memory_space<vmem>>, vector<8x4xf32>
    tpu.vector_store %arg3[%c0_31, %c4], %80 {strides = array<i32>} : memref<8x8xf32, #tpu.memory_space<vmem>>, vector<8x4xf32>,
    return
  }
}

</mosaic_0001>

<llo_original>
// kernel: sac_actor_forward.1
$region0: #{sac_actor_forward.1}
  #allocation0 [shape = 'u32[]', space=smem, size = 0x4, offset = 0x4, fixed_abs, tag = 'smem constant byte address 0x4 - core index']
  #allocation1 [shape = 'u32[144,128]{1,0:T(1,128)}', space=vmem, size = 0x12000, scoped, tag = 'internal scratch']
  %s0 = inlined_call_operand.vmem [shape: f32[8,16], index: 0, kind: input, shape index: {}]
  %s1 = inlined_call_operand.vmem [shape: f32[8,4], index: 1, kind: input, shape index: {}]
  %s2 = inlined_call_operand.hbm [shape: bf16[672,128], index: 2, kind: input, shape index: {}]
  %s3 = inlined_call_operand.vmem [shape: f32[8,8], index: 3, kind: output, shape index: {}]
  %s4 = sld [smem:[#allocation0]]
  $region26: #{sac_actor_forward.1} parent=0
    _
  %s6 = ssub.s32 1, %s4
  %s7 = scalar_select 0, %s6, %s4
  $region1: #{sac_actor_forward.1} parent=0
    #allocation2 [shape = 'u8[172032]{0}', space=vmem, size = 0x2a000, scoped, tag = 'input window, operand 2, single buffered']
    #allocation3 [shape = 's32[1]{0}', space=sflag, size = 0x4, scoped, tag = 'scoped memory for sac_actor_forward.1']
    %8 = vsyncpa [#allocation3], 0
    // Predicated region
    $region2: #{sac_actor_forward.1} parent=1 // pred_check
      _
    $region3: #{sac_actor_forward.1} parent=1 // pred_check_branch
      %10 = sbr.rel (0) target = $region5
    $region4: #{sac_actor_forward.1} parent=1 // pred_region
      _
    $region5: #{sac_actor_forward.1} parent=1 // pred_fallthru
      _
    // Predicated region
    $region6: #{sac_actor_forward.1} parent=1 // pred_check
      _
    $region7: #{sac_actor_forward.1} parent=1 // pred_check_branch
      %12 = sbr.rel (0) target = $region9
    $region8: #{sac_actor_forward.1} parent=1 // pred_region
      _
    $region9: #{sac_actor_forward.1} parent=1 // pred_fallthru
      _
    // Predicated region
    $region10: #{sac_actor_forward.1} parent=1 // pred_check
      _
    $region11: #{sac_actor_forward.1} parent=1 // pred_check_branch
      %14 = sbr.rel (0) target = $region13
    $region12: #{sac_actor_forward.1} parent=1 // pred_region
      %s16 = ssub.s32 5376, 5376
      %17 = vsyncadd [#allocation3], %s16
      %s18 = sshll.u32 [#allocation2], 4
      %s19 = int_to_ptr.vmem [resolvable:$true] %s18
      %24 = dma.hbm_to_vmem [thread:$0]  %s2, 5376, %s19, [#allocation3], 64, 64, 4
    $region13: #{sac_actor_forward.1} parent=1 // pred_fallthru
      _
    // Predicated region
    $region14: #{sac_actor_forward.1} parent=1 // pred_check
      _
    $region15: #{sac_actor_forward.1} parent=1 // pred_check_branch
      %26 = sbr.rel (0) target = $region17
    $region16: #{sac_actor_forward.1} parent=1 // pred_region
      %27 = dma.done [#allocation3], 5376
    $region17: #{sac_actor_forward.1} parent=1 // pred_fallthru
      _
    %v29 = vld [vmem:[#allocation2 + $0x148] sm:$0xf]
    %v30 = vunpack.c.l.bf16 %v29
    %v31 = vld [vmem:[%s0] sm:$0xff]
    %v32 = vpack.c.bf16 %v31, %v31
    %v33 = vld [vmem:[#allocation2] sm:$0xf]
    %v34 = vld [vmem:[#allocation2 + $0x4] sm:$0xf]
    %v35 = vlaneseq
    %v36 = vshrl.u32 %v35, 7
    %v37 = vsub.s32 0, %v36
    %v38 = vrot.slane %v30, %v37
    %v41 = vunpack.c.l.b16 %v33
    %v42 = vunpack.c.l.b16 %v34
    %v43 = vpack.c.b16 %v42, %v41
    %vm45 = vcmask 130048
    %v47 = vsel %vm45, %v32, 0
    %49 = vmatprep.subr.bf16.mxu0 0
    %50 = vmatpush1.bf16.msra.mxu0 %v43
    %51 = vmatprep.subr.bf16.mxu0 0
    %52 = vmatpush1.bf16.msra.mxu0 0
    %53 = vmatprep.subr.bf16.mxu0 0
    %54 = vmatpush1.bf16.msra.mxu0 0
    %55 = vmatprep.subr.bf16.mxu0 0
    %56 = vmatpush1.bf16.msra.mxu0 0
    %57 = vmatprep.subr.bf16.mxu0 0
    %58 = vmatpush1.bf16.msra.mxu0 0
    %59 = vmatprep.subr.bf16.mxu0 0
    %60 = vmatpush1.bf16.msra.mxu0 0
    %61 = vmatprep.subr.bf16.mxu0 0
    %62 = vmatpush1.bf16.msra.mxu0 0
    %63 = vmatprep.subr.bf16.mxu0 0
    %64 = vmatpush1.bf16.msra.mxu0 0
    %65 = vmatprep.subr.bf16.mxu0 0
    %66 = vmatpush1.bf16.msra.mxu0 0
    %67 = vmatprep.subr.bf16.mxu0 0
    %68 = vmatpush1.bf16.msra.mxu0 0
    %69 = vmatprep.subr.bf16.mxu0 0
    %70 = vmatpush1.bf16.msra.mxu0 0
    %71 = vmatprep.subr.bf16.mxu0 0
    %72 = vmatpush1.bf16.msra.mxu0 0
    %73 = vmatprep.subr.bf16.mxu0 0
    %74 = vmatpush1.bf16.msra.mxu0 0
    %75 = vmatprep.subr.bf16.mxu0 0
    %76 = vmatpush1.bf16.msra.mxu0 0
    %77 = vmatprep.subr.bf16.mxu0 0
    %78 = vmatpush1.bf16.msra.mxu0 0
    %79 = vmatprep.subr.bf16.mxu0 0
    %80 = vmatpush1.bf16.msra.mxu0 0
    %81 = vmatprep.mubr.bf16.mxu0 0
    %82 = vmatmul.mubr.bf16.gmra.mrb[0].mxu0 %v47
    %v83 = vpop.f32.mrb[0].mxu0
    %v84 = vadd.f32 %v38, %v83
    %v85 = vpop.f32.mrb[0].mxu0
    %v86 = vpop.f32.mrb[0].mxu0
    %v87 = vpop.f32.mrb[0].mxu0
    %88 = vdwg.mxu0
    %v89 = vmax.f32 %v84, 0.0
    %v90 = vpack.c.bf16 %v89, %v89
    %v91 = vld [vmem:[#allocation2 + $0x8] sm:$0xf]
    %v92 = vld [vmem:[#allocation2 + $0xc] sm:$0xf]
    %v93 = vld [vmem:[#allocation2 + $0x10] sm:$0xf]
    %v94 = vld [vmem:[#allocation2 + $0x14] sm:$0xf]
    %v95 = vld [vmem:[#allocation2 + $0x18] sm:$0xf]
    %v96 = vld [vmem:[#allocation2 + $0x1c] sm:$0xf]
    %v97 = vld [vmem:[#allocation2 + $0x20] sm:$0xf]
    %v98 = vld [vmem:[#allocation2 + $0x24] sm:$0xf]
    %v99 = vld [vmem:[#allocation2 + $0x28] sm:$0xf]
    %v100 = vld [vmem:[#allocation2 + $0x2c] sm:$0xf]
    %v101 = vld [vmem:[#allocation2 + $0x30] sm:$0xf]
    %v102 = vld [vmem:[#allocation2 + $0x34] sm:$0xf]
    %v103 = vld [vmem:[#allocation2 + $0x38] sm:$0xf]
    %v104 = vld [vmem:[#allocation2 + $0x3c] sm:$0xf]
    %v105 = vld [vmem:[#allocation2 + $0x40] sm:$0xf]
    %v106 = vld [vmem:[#allocation2 + $0x44] sm:$0xf]
    %v107 = vlaneseq
    %v108 = vshrl.u32 %v107, 7
    %v109 = vsub.s32 1, %v108
    %v110 = vrot.slane %v30, %v109
    %v127 = vunpack.c.l.b16 %v91
    %v128 = vunpack.c.l.b16 %v92
    %v129 = vunpack.c.l.b16 %v93
    %v130 = vunpack.c.l.b16 %v94
    %v131 = vunpack.c.l.b16 %v95
    %v132 = vunpack.c.l.b16 %v96
    %v133 = vunpack.c.l.b16 %v97
    %v134 = vunpack.c.l.b16 %v98
    %v135 = vunpack.c.l.b16 %v99
    %v136 = vunpack.c.l.b16 %v100
    %v137 = vunpack.c.l.b16 %v101
    %v138 = vunpack.c.l.b16 %v102
    %v139 = vunpack.c.l.b16 %v103
    %v140 = vunpack.c.l.b16 %v104
    %v141 = vunpack.c.l.b16 %v105
    %v142 = vunpack.c.l.b16 %v106
    %v143 = vpack.c.b16 %v128, %v127
    %v144 = vpack.c.b16 %v130, %v129
    %v145 = vpack.c.b16 %v132, %v131
    %v146 = vpack.c.b16 %v134, %v133
    %v147 = vpack.c.b16 %v136, %v135
    %v148 = vpack.c.b16 %v138, %v137
    %v149 = vpack.c.b16 %v140, %v139
    %v150 = vpack.c.b16 %v142, %v141
    %159 = vmatprep.subr.bf16.mxu0 0
    %160 = vmatpush1.bf16.msra.mxu0 %v143
    %161 = vmatprep.subr.bf16.mxu0 0
    %162 = vmatpush1.bf16.msra.mxu0 %v144
    %163 = vmatprep.subr.bf16.mxu0 0
    %164 = vmatpush1.bf16.msra.mxu0 %v145
    %165 = vmatprep.subr.bf16.mxu0 0
    %166 = vmatpush1.bf16.msra.mxu0 %v146
    %167 = vmatprep.subr.bf16.mxu0 0
    %168 = vmatpush1.bf16.msra.mxu0 %v147
    %169 = vmatprep.subr.bf16.mxu0 0
    %170 = vmatpush1.bf16.msra.mxu0 %v148
    %171 = vmatprep.subr.bf16.mxu0 0
    %172 = vmatpush1.bf16.msra.mxu0 %v149
    %173 = vmatprep.subr.bf16.mxu0 0
    %174 = vmatpush1.bf16.msra.mxu0 %v150
    %175 = vmatprep.subr.bf16.mxu0 0
    %176 = vmatpush1.bf16.msra.mxu0 0
    %177 = vmatprep.subr.bf16.mxu0 0
    %178 = vmatpush1.bf16.msra.mxu0 0
    %179 = vmatprep.subr.bf16.mxu0 0
    %180 = vmatpush1.bf16.msra.mxu0 0
    %181 = vmatprep.subr.bf16.mxu0 0
    %182 = vmatpush1.bf16.msra.mxu0 0
    %183 = vmatprep.subr.bf16.mxu0 0
    %184 = vmatpush1.bf16.msra.mxu0 0
    %185 = vmatprep.subr.bf16.mxu0 0
    %186 = vmatpush1.bf16.msra.mxu0 0
    %187 = vmatprep.subr.bf16.mxu0 0
    %188 = vmatpush1.bf16.msra.mxu0 0
    %189 = vmatprep.subr.bf16.mxu0 0
    %190 = vmatpush1.bf16.msra.mxu0 0
    %191 = vmatprep.mubr.bf16.mxu0 0
    %192 = vmatmul.mubr.bf16.gmra.mrb[0].mxu0 %v90
    %v193 = vpop.f32.mrb[0].mxu0
    %v194 = vadd.f32 %v110, %v193
    %v195 = vpop.f32.mrb[0].mxu0
    %v196 = vpop.f32.mrb[0].mxu0
    %v197 = vpop.f32.mrb[0].mxu0
    %198 = vdwg.mxu0
    %v199 = vmax.f32 %v194, 0.0
    %v200 = vld [vmem:[#allocation2 + $0x48] sm:$0xf]
    %v201 = vld [vmem:[#allocation2 + $0x4c] sm:$0xf]
    %v202 = vld [vmem:[#allocation2 + $0x50] sm:$0xf]
    %v203 = vld [vmem:[#allocation2 + $0x54] sm:$0xf]
    %v204 = vld [vmem:[#allocation2 + $0x58] sm:$0xf]
    %v205 = vld [vmem:[#allocation2 + $0x5c] sm:$0xf]
    %v206 = vld [vmem:[#allocation2 + $0x60] sm:$0xf]
    %v207 = vld [vmem:[#allocation2 + $0x64] sm:$0xf]
    %v208 = vld [vmem:[#allocation2 + $0x68] sm:$0xf]
    %v209 = vld [vmem:[#allocation2 + $0x6c] sm:$0xf]
    %v210 = vld [vmem:[#allocation2 + $0x70] sm:$0xf]
    %v211 = vld [vmem:[#allocation2 + $0x74] sm:$0xf]
    %v212 = vld [vmem:[#allocation2 + $0x78] sm:$0xf]
    %v213 = vld [vmem:[#allocation2 + $0x7c] sm:$0xf]
    %v214 = vld [vmem:[#allocation2 + $0x80] sm:$0xf]
    %v215 = vld [vmem:[#allocation2 + $0x84] sm:$0xf]
    %v216 = vlaneseq
    %v217 = vshrl.u32 %v216, 7
    %v218 = vsub.s32 2, %v217
    %v219 = vrot.slane %v30, %v218
    %v236 = vunpack.c.l.b16 %v200
    %v237 = vunpack.c.l.b16 %v201
    %v238 = vunpack.c.l.b16 %v202
    %v239 = vunpack.c.l.b16 %v203
    %v240 = vunpack.c.l.b16 %v204
    %v241 = vunpack.c.l.b16 %v205
    %v242 = vunpack.c.l.b16 %v206
    %v243 = vunpack.c.l.b16 %v207
    %v244 = vunpack.c.l.b16 %v208
    %v245 = vunpack.c.l.b16 %v209
    %v246 = vunpack.c.l.b16 %v210
    %v247 = vunpack.c.l.b16 %v211
    %v248 = vunpack.c.l.b16 %v212
    %v249 = vunpack.c.l.b16 %v213
    %v250 = vunpack.c.l.b16 %v214
    %v251 = vunpack.c.l.b16 %v215
    %v252 = vpack.c.b16 %v237, %v236
    %v253 = vpack.c.b16 %v239, %v238
    %v254 = vpack.c.b16 %v241, %v240
    %v255 = vpack.c.b16 %v243, %v242
    %v256 = vpack.c.b16 %v245, %v244
    %v257 = vpack.c.b16 %v247, %v246
    %v258 = vpack.c.b16 %v249, %v248
    %v259 = vpack.c.b16 %v251, %v250
    %268 = vmatprep.subr.bf16.mxu0 0
    %269 = vmatpush1.bf16.msra.mxu0 %v252
    %270 = vmatprep.subr.bf16.mxu0 0
    %271 = vmatpush1.bf16.msra.mxu0 %v253
    %272 = vmatprep.subr.bf16.mxu0 0
    %273 = vmatpush1.bf16.msra.mxu0 %v254
    %274 = vmatprep.subr.bf16.mxu0 0
    %275 = vmatpush1.bf16.msra.mxu0 %v255
    %276 = vmatprep.subr.bf16.mxu0 0
    %277 = vmatpush1.bf16.msra.mxu0 %v256
    %278 = vmatprep.subr.bf16.mxu0 0
    %279 = vmatpush1.bf16.msra.mxu0 %v257
    %280 = vmatprep.subr.bf16.mxu0 0
    %281 = vmatpush1.bf16.msra.mxu0 %v258
    %282 = vmatprep.subr.bf16.mxu0 0
    %283 = vmatpush1.bf16.msra.mxu0 %v259
    %284 = vmatprep.subr.bf16.mxu0 0
    %285 = vmatpush1.bf16.msra.mxu0 0
    %286 = vmatprep.subr.bf16.mxu0 0
    %287 = vmatpush1.bf16.msra.mxu0 0
    %288 = vmatprep.subr.bf16.mxu0 0
    %289 = vmatpush1.bf16.msra.mxu0 0
    %290 = vmatprep.subr.bf16.mxu0 0
    %291 = vmatpush1.bf16.msra.mxu0 0
    %292 = vmatprep.subr.bf16.mxu0 0
    %293 = vmatpush1.bf16.msra.mxu0 0
    %294 = vmatprep.subr.bf16.mxu0 0
    %295 = vmatpush1.bf16.msra.mxu0 0
    %296 = vmatprep.subr.bf16.mxu0 0
    %297 = vmatpush1.bf16.msra.mxu0 0
    %298 = vmatprep.subr.bf16.mxu0 0
    %299 = vmatpush1.bf16.msra.mxu0 0
    %300 = vmatprep.mubr.bf16.mxu0 0
    %301 = vmatmul.mubr.bf16.gmra.mrb[0].mxu0 %v90
    %v302 = vpop.f32.mrb[0].mxu0
    %v303 = vadd.f32 %v219, %v302
    %v304 = vpop.f32.mrb[0].mxu0
    %v305 = vpop.f32.mrb[0].mxu0
    %v306 = vpop.f32.mrb[0].mxu0
    %307 = vdwg.mxu0
    %v308 = vmax.f32 %v303, 0.0
    %v309 = vpack.c.bf16 %v199, %v199
    %v310 = vld [vmem:[#allocation2 + $0x88] sm:$0xf]
    %v311 = vld [vmem:[#allocation2 + $0x8c] sm:$0xf]
    %v312 = vld [vmem:[#allocation2 + $0x90] sm:$0xf]
    %v313 = vld [vmem:[#allocation2 + $0x94] sm:$0xf]
    %v314 = vld [vmem:[#allocation2 + $0x98] sm:$0xf]
    %v315 = vld [vmem:[#allocation2 + $0x9c] sm:$0xf]
    %v316 = vld [vmem:[#allocation2 + $0xa0] sm:$0xf]
    %v317 = vld [vmem:[#allocation2 + $0xa4] sm:$0xf]
    %v318 = vld [vmem:[#allocation2 + $0xa8] sm:$0xf]
    %v319 = vld [vmem:[#allocation2 + $0xac] sm:$0xf]
    %v320 = vld [vmem:[#allocation2 + $0xb0] sm:$0xf]
    %v321 = vld [vmem:[#allocation2 + $0xb4] sm:$0xf]
    %v322 = vld [vmem:[#allocation2 + $0xb8] sm:$0xf]
    %v323 = vld [vmem:[#allocation2 + $0xbc] sm:$0xf]
    %v324 = vld [vmem:[#allocation2 + $0xc0] sm:$0xf]
    %v325 = vld [vmem:[#allocation2 + $0xc4] sm:$0xf]
    %v326 = vpack.c.bf16 %v308, %v308
    %v327 = vld [vmem:[#allocation2 + $0xc8] sm:$0xf]
    %v328 = vld [vmem:[#allocation2 + $0xcc] sm:$0xf]
    %v329 = vld [vmem:[#allocation2 + $0xd0] sm:$0xf]
    %v330 = vld [vmem:[#allocation2 + $0xd4] sm:$0xf]
    %v331 = vld [vmem:[#allocation2 + $0xd8] sm:$0xf]
    %v332 = vld [vmem:[#allocation2 + $0xdc] sm:$0xf]
    %v333 = vld [vmem:[#allocation2 + $0xe0] sm:$0xf]
    %v334 = vld [vmem:[#allocation2 + $0xe4] sm:$0xf]
    %v335 = vld [vmem:[#allocation2 + $0xe8] sm:$0xf]
    %v336 = vld [vmem:[#allocation2 + $0xec] sm:$0xf]
    %v337 = vld [vmem:[#allocation2 + $0xf0] sm:$0xf]
    %v338 = vld [vmem:[#allocation2 + $0xf4] sm:$0xf]
    %v339 = vld [vmem:[#allocation2 + $0xf8] sm:$0xf]
    %v340 = vld [vmem:[#allocation2 + $0xfc] sm:$0xf]
    %v341 = vld [vmem:[#allocation2 + $0x100] sm:$0xf]
    %v342 = vld [vmem:[#allocation2 + $0x104] sm:$0xf]
    %v359 = vunpack.c.l.b16 %v327
    %v360 = vunpack.c.l.b16 %v328
    %v361 = vunpack.c.l.b16 %v329
    %v362 = vunpack.c.l.b16 %v330
    %v363 = vunpack.c.l.b16 %v331
    %v364 = vunpack.c.l.b16 %v332
    %v365 = vunpack.c.l.b16 %v333
    %v366 = vunpack.c.l.b16 %v334
    %v367 = vunpack.c.l.b16 %v335
    %v368 = vunpack.c.l.b16 %v336
    %v369 = vunpack.c.l.b16 %v337
    %v370 = vunpack.c.l.b16 %v338
    %v371 = vunpack.c.l.b16 %v339
    %v372 = vunpack.c.l.b16 %v340
    %v373 = vunpack.c.l.b16 %v341
    %v374 = vunpack.c.l.b16 %v342
    %v375 = vpack.c.b16 %v360, %v359
    %v376 = vpack.c.b16 %v362, %v361
    %v377 = vpack.c.b16 %v364, %v363
    %v378 = vpack.c.b16 %v366, %v365
    %v379 = vpack.c.b16 %v368, %v367
    %v380 = vpack.c.b16 %v370, %v369
    %v381 = vpack.c.b16 %v372, %v371
    %v382 = vpack.c.b16 %v374, %v373
    %391 = vmatprep.subr.bf16.mxu0 0
    %392 = vmatpush1.bf16.msra.mxu0 %v375
    %393 = vmatprep.subr.bf16.mxu0 0
    %394 = vmatpush1.bf16.msra.mxu0 %v376
    %395 = vmatprep.subr.bf16.mxu0 0
    %396 = vmatpush1.bf16.msra.mxu0 %v377
    %397 = vmatprep.subr.bf16.mxu0 0
    %398 = vmatpush1.bf16.msra.mxu0 %v378
    %399 = vmatprep.subr.bf16.mxu0 0
    %400 = vmatpush1.bf16.msra.mxu0 %v379
    %401 = vmatprep.subr.bf16.mxu0 0
    %402 = vmatpush1.bf16.msra.mxu0 %v380
    %403 = vmatprep.subr.bf16.mxu0 0
    %404 = vmatpush1.bf16.msra.mxu0 %v381
    %405 = vmatprep.subr.bf16.mxu0 0
    %406 = vmatpush1.bf16.msra.mxu0 %v382
    %407 = vmatprep.subr.bf16.mxu0 0
    %408 = vmatpush1.bf16.msra.mxu0 0
    %409 = vmatprep.subr.bf16.mxu0 0
    %410 = vmatpush1.bf16.msra.mxu0 0
    %411 = vmatprep.subr.bf16.mxu0 0
    %412 = vmatpush1.bf16.msra.mxu0 0
    %413 = vmatprep.subr.bf16.mxu0 0
    %414 = vmatpush1.bf16.msra.mxu0 0
    %415 = vmatprep.subr.bf16.mxu0 0
    %416 = vmatpush1.bf16.msra.mxu0 0
    %417 = vmatprep.subr.bf16.mxu0 0
    %418 = vmatpush1.bf16.msra.mxu0 0
    %419 = vmatprep.subr.bf16.mxu0 0
    %420 = vmatpush1.bf16.msra.mxu0 0
    %421 = vmatprep.subr.bf16.mxu0 0
    %422 = vmatpush1.bf16.msra.mxu0 0
    %423 = vmatprep.mubr.bf16.mxu0 0
    %424 = vmatmul.mubr.bf16.gmra.mrb[0].mxu0 %v326
    %v425 = vpop.f32.mrb[0].mxu0
    %v426 = vadd.f32 0.0, %v425
    %v427 = vpop.f32.mrb[0].mxu0
    %v428 = vpop.f32.mrb[0].mxu0
    %v429 = vpop.f32.mrb[0].mxu0
    %430 = vdwg.mxu0
    %v447 = vunpack.c.l.b16 %v310
    %v448 = vunpack.c.l.b16 %v311
    %v449 = vunpack.c.l.b16 %v312
    %v450 = vunpack.c.l.b16 %v313
    %v451 = vunpack.c.l.b16 %v314
    %v452 = vunpack.c.l.b16 %v315
    %v453 = vunpack.c.l.b16 %v316
    %v454 = vunpack.c.l.b16 %v317
    %v455 = vunpack.c.l.b16 %v318
    %v456 = vunpack.c.l.b16 %v319
    %v457 = vunpack.c.l.b16 %v320
    %v458 = vunpack.c.l.b16 %v321
    %v459 = vunpack.c.l.b16 %v322
    %v460 = vunpack.c.l.b16 %v323
    %v461 = vunpack.c.l.b16 %v324
    %v462 = vunpack.c.l.b16 %v325
    %v463 = vpack.c.b16 %v448, %v447
    %v464 = vpack.c.b16 %v450, %v449
    %v465 = vpack.c.b16 %v452, %v451
    %v466 = vpack.c.b16 %v454, %v453
    %v467 = vpack.c.b16 %v456, %v455
    %v468 = vpack.c.b16 %v458, %v457
    %v469 = vpack.c.b16 %v460, %v459
    %v470 = vpack.c.b16 %v462, %v461
    %479 = vmatprep.subr.bf16.mxu0 0
    %480 = vmatpush1.bf16.msra.mxu0 %v463
    %481 = vmatprep.subr.bf16.mxu0 0
    %482 = vmatpush1.bf16.msra.mxu0 %v464
    %483 = vmatprep.subr.bf16.mxu0 0
    %484 = vmatpush1.bf16.msra.mxu0 %v465
    %485 = vmatprep.subr.bf16.mxu0 0
    %486 = vmatpush1.bf16.msra.mxu0 %v466
    %487 = vmatprep.subr.bf16.mxu0 0
    %488 = vmatpush1.bf16.msra.mxu0 %v467
    %489 = vmatprep.subr.bf16.mxu0 0
    %490 = vmatpush1.bf16.msra.mxu0 %v468
    %491 = vmatprep.subr.bf16.mxu0 0
    %492 = vmatpush1.bf16.msra.mxu0 %v469
    %493 = vmatprep.subr.bf16.mxu0 0
    %494 = vmatpush1.bf16.msra.mxu0 %v470
    %495 = vmatprep.subr.bf16.mxu0 0
    %496 = vmatpush1.bf16.msra.mxu0 0
    %497 = vmatprep.subr.bf16.mxu0 0
    %498 = vmatpush1.bf16.msra.mxu0 0
    %499 = vmatprep.subr.bf16.mxu0 0
    %500 = vmatpush1.bf16.msra.mxu0 0
    %501 = vmatprep.subr.bf16.mxu0 0
    %502 = vmatpush1.bf16.msra.mxu0 0
    %503 = vmatprep.subr.bf16.mxu0 0
    %504 = vmatpush1.bf16.msra.mxu0 0
    %505 = vmatprep.subr.bf16.mxu0 0
    %506 = vmatpush1.bf16.msra.mxu0 0
    %507 = vmatprep.subr.bf16.mxu0 0
    %508 = vmatpush1.bf16.msra.mxu0 0
    %509 = vmatprep.subr.bf16.mxu0 0
    %510 = vmatpush1.bf16.msra.mxu0 0
    %511 = vmatprep.mubr.bf16.mxu0 0
    %512 = vmatmul.mubr.bf16.gmra.mrb[0].mxu0 %v309
    %v513 = vpop.f32.mrb[0].mxu0
    %v514 = vadd.f32 %v426, %v513
    %v515 = vpop.f32.mrb[0].mxu0
    %v516 = vpop.f32.mrb[0].mxu0
    %v517 = vpop.f32.mrb[0].mxu0
    %518 = vdwg.mxu0
    %v519 = vlaneseq
    %v520 = vshrl.u32 %v519, 7
    %v521 = vsub.s32 3, %v520
    %v522 = vrot.slane %v30, %v521
    %v523 = vadd.f32 %v514, %v522
    %v524 = vpack.c.bf16 %v523, %v523
    %v525 = vld [vmem:[#allocation2 + $0x108] sm:$0xf]
    %v526 = vld [vmem:[#allocation2 + $0x10c] sm:$0xf]
    %v527 = vld [vmem:[#allocation2 + $0x110] sm:$0xf]
    %v528 = vld [vmem:[#allocation2 + $0x114] sm:$0xf]
    %v529 = vld [vmem:[#allocation2 + $0x118] sm:$0xf]
    %v530 = vld [vmem:[#allocation2 + $0x11c] sm:$0xf]
    %v531 = vld [vmem:[#allocation2 + $0x120] sm:$0xf]
    %v532 = vld [vmem:[#allocation2 + $0x124] sm:$0xf]
    %v533 = vld [vmem:[#allocation2 + $0x128] sm:$0xf]
    %v534 = vld [vmem:[#allocation2 + $0x12c] sm:$0xf]
    %v535 = vld [vmem:[#allocation2 + $0x130] sm:$0xf]
    %v536 = vld [vmem:[#allocation2 + $0x134] sm:$0xf]
    %v537 = vld [vmem:[#allocation2 + $0x138] sm:$0xf]
    %v538 = vld [vmem:[#allocation2 + $0x13c] sm:$0xf]
    %v539 = vld [vmem:[#allocation2 + $0x140] sm:$0xf]
    %v540 = vld [vmem:[#allocation2 + $0x144] sm:$0xf]
    %v541 = vlaneseq
    %v542 = vshrl.u32 %v541, 7
    %v543 = vsub.s32 4, %v542
    %v544 = vrot.slane %v30, %v543
    %v561 = vunpack.c.l.b16 %v525
    %v562 = vunpack.c.l.b16 %v526
    %v563 = vunpack.c.l.b16 %v527
    %v564 = vunpack.c.l.b16 %v528
    %v565 = vunpack.c.l.b16 %v529
    %v566 = vunpack.c.l.b16 %v530
    %v567 = vunpack.c.l.b16 %v531
    %v568 = vunpack.c.l.b16 %v532
    %v569 = vunpack.c.l.b16 %v533
    %v570 = vunpack.c.l.b16 %v534
    %v571 = vunpack.c.l.b16 %v535
    %v572 = vunpack.c.l.b16 %v536
    %v573 = vunpack.c.l.b16 %v537
    %v574 = vunpack.c.l.b16 %v538
    %v575 = vunpack.c.l.b16 %v539
    %v576 = vunpack.c.l.b16 %v540
    %v577 = vpack.c.b16 %v562, %v561
    %v578 = vpack.c.b16 %v564, %v563
    %v579 = vpack.c.b16 %v566, %v565
    %v580 = vpack.c.b16 %v568, %v567
    %v581 = vpack.c.b16 %v570, %v569
    %v582 = vpack.c.b16 %v572, %v571
    %v583 = vpack.c.b16 %v574, %v573
    %v584 = vpack.c.b16 %v576, %v575
    %593 = vmatprep.subr.bf16.mxu0 0
    %594 = vmatpush1.bf16.msra.mxu0 %v577
    %595 = vmatprep.subr.bf16.mxu0 0
    %596 = vmatpush1.bf16.msra.mxu0 %v578
    %597 = vmatprep.subr.bf16.mxu0 0
    %598 = vmatpush1.bf16.msra.mxu0 %v579
    %599 = vmatprep.subr.bf16.mxu0 0
    %600 = vmatpush1.bf16.msra.mxu0 %v580
    %601 = vmatprep.subr.bf16.mxu0 0
    %602 = vmatpush1.bf16.msra.mxu0 %v581
    %603 = vmatprep.subr.bf16.mxu0 0
    %604 = vmatpush1.bf16.msra.mxu0 %v582
    %605 = vmatprep.subr.bf16.mxu0 0
    %606 = vmatpush1.bf16.msra.mxu0 %v583
    %607 = vmatprep.subr.bf16.mxu0 0
    %608 = vmatpush1.bf16.msra.mxu0 %v584
    %609 = vmatprep.subr.bf16.mxu0 0
    %610 = vmatpush1.bf16.msra.mxu0 0
    %611 = vmatprep.subr.bf16.mxu0 0
    %612 = vmatpush1.bf16.msra.mxu0 0
    %613 = vmatprep.subr.bf16.mxu0 0
    %614 = vmatpush1.bf16.msra.mxu0 0
    %615 = vmatprep.subr.bf16.mxu0 0
    %616 = vmatpush1.bf16.msra.mxu0 0
    %617 = vmatprep.subr.bf16.mxu0 0
    %618 = vmatpush1.bf16.msra.mxu0 0
    %619 = vmatprep.subr.bf16.mxu0 0
    %620 = vmatpush1.bf16.msra.mxu0 0
    %621 = vmatprep.subr.bf16.mxu0 0
    %622 = vmatpush1.bf16.msra.mxu0 0
    %623 = vmatprep.subr.bf16.mxu0 0
    %624 = vmatpush1.bf16.msra.mxu0 0
    %625 = vmatprep.mubr.bf16.mxu0 0
    %626 = vmatmul.mubr.bf16.gmra.mrb[0].mxu0 %v524
    %v627 = vpop.f32.mrb[0].mxu0
    %v628 = vadd.f32 %v544, %v627
    %v629 = vpop.f32.mrb[0].mxu0
    %v630 = vpop.f32.mrb[0].mxu0
    %v631 = vpop.f32.mrb[0].mxu0
    %632 = vdwg.mxu0
    %v633 = vmul.f32 %v628, 1.442695
    %v634 = vpow.pop %v633
    %v635 = vld [vmem:[%s1] sm:$0xff]
    %637 = vrot.lane.b32.xlu0 %v635, 4
    %v638 = vpop.permute.xlu0 %637
    %v640 = vmul.f32 %v634, %v638
    %642 = vrot.lane.b32.xlu0 %v640, 124
    %v643 = vpop.permute.xlu0 %642
    %v645 = vadd.f32 %v628, %v643
    %v646 = vmul.f32 %v635, -0.5
    %v647 = vmul.f32 %v646, %v635
    %649 = vrot.lane.b32.xlu0 %v628, 124
    %v650 = vpop.permute.xlu0 %649
    %v652 = vsub.f32 %v647, %v650
    %v653 = vsub.f32 %v652, 0.9189385
    %v654 = vmul.f32 %v645, -2.0
    %v655 = vmax.f32 %v654, 0.0
    %v656 = vand.u32 2147483647, %v654
    %v657 = vsub.f32 0.0, %v656
    %v658 = vmul.f32 %v657, 1.442695
    %v659 = vpow.pop %v658
    %v660 = vadd.f32 %v659, 1.0
    %v661 = vlog2.pop %v660
    %v662 = vmul.f32 %v661, 0.6931472
    %v663 = vmul.f32 -0.5, %v659
    %v664 = vadd.f32 %v663, 1.0
    %v665 = vmul.f32 %v664, %v659
    %v666 = vand.u32 2147483647, %v659
    %vm667 = vcmp.lt.f32.partialorder %v666, 0.0004427343
    %v668 = vsel %vm667, %v665, %v662
    %v669 = vadd.f32 %v655, %v668
    %v670 = vsub.f32 0.6931472, %v645
    %v671 = vsub.f32 %v670, %v669
    %v672 = vmul.f32 %v671, 2.0
    %v673 = vsub.f32 %v653, %v672
    %vm674 = vcmask 31744
    %v675 = vsel %vm674, %v673, 0.0
    %676 = vadd.xlane.f32.xlu0 %v675
    %v677 = vpop.xlane.xlu0 %676
    %v678 = vtanh.pop %v645
    %v679 = vmul.f32 %v678, 2.0
    %680 = vst.msk [vmem:[%s3] sm:$0xff] %vm674, %v679
    %vm681 = vcmask 64544
    %682 = vst.msk [vmem:[%s3] sm:$0xff] %vm681, %v677
    // Predicated region
    $region18: #{sac_actor_forward.1} parent=1 // pred_check
      _
    $region19: #{sac_actor_forward.1} parent=1 // pred_check_branch
      %684 = sbr.rel (0) target = $region21
    $region20: #{sac_actor_forward.1} parent=1 // pred_region
      _
    $region21: #{sac_actor_forward.1} parent=1 // pred_fallthru
      _
    // Predicated region
    $region22: #{sac_actor_forward.1} parent=1 // pred_check
      _
    $region23: #{sac_actor_forward.1} parent=1 // pred_check_branch
      %686 = sbr.rel (0) target = $region25
    $region24: #{sac_actor_forward.1} parent=1 // pred_region
      _
    $region25: #{sac_actor_forward.1} parent=1 // pred_fallthru
      _
    %687 = vsyncpa [#allocation3], 1

</llo_original>
